<compile_context>
chip_gen: v6e
topology: v6e:2x2x1
jax: 0.10.0
libtpu: 0.0.40
codegen_flags: <defaults>
</compile_context>

<pallas_src>
import jax
import jax.numpy as jnp
from jax.experimental import pallas as pl
from jax.experimental.pallas import tpu as pltpu


def _nsp_kernel(x_ref, w_ref, b_ref, o_ref):
    # x_ref : (TM, D)  activation tile (native dtype, e.g. bf16 / f32)
    # w_ref : (D, 2)   weight (transposed vs. PyTorch layout), VMEM-resident
    # b_ref : (1, 2)   bias (f32)
    # o_ref : (TM, 2)  log-probabilities
    logits = jnp.dot(x_ref[...], w_ref[...],
                     preferred_element_type=jnp.float32)
    logits = logits + b_ref[...].astype(jnp.float32)

    # Closed-form 2-class log-softmax:
    #   d   = logit1 - logit0
    #   lse = logit0 + softplus(d)     (softplus computed stably)
    #   log_softmax = logits - lse  ->  [-softplus(d), d - softplus(d)]
    l0 = logits[:, 0:1]
    d = logits[:, 1:2] - l0
    sp = jnp.maximum(d, 0.0) + jnp.log1p(jnp.exp(-jnp.abs(d)))
    lse = l0 + sp
    o_ref[...] = (logits - lse).astype(o_ref.dtype)


def _round_up(x, m):
    return ((x + m - 1) // m) * m


def _choose_tm(m_rows_8aligned, d_model, itemsize,
               input_dbuf_budget_bytes=16 << 20, tm_cap=4096):
    # Double-buffered (tm, D) input tile must fit the scoped-VMEM budget on all
    # of v5e / v6e / v7x (v7x has only 64 MiB physical VMEM per TensorCore).
    tm = input_dbuf_budget_bytes // (2 * d_model * itemsize)
    tm = max(8, min(int(tm), tm_cap))
    tm = (tm // 8) * 8
    # No point in a tile bigger than the (8-aligned) row count itself.
    tm = min(tm, m_rows_8aligned)
    return max(8, tm)


def next_sentence_prediction(x, weight, bias, *, tm=None):
    """x: (..., D); weight: (2, D) PyTorch nn.Linear layout; bias: (2,)."""
    orig_shape = x.shape
    d_model = orig_shape[-1]
    x2d = x.reshape(-1, d_model)                      # (M, D)
    M = x2d.shape[0]
    itemsize = jnp.dtype(x2d.dtype).itemsize

    if tm is None:
        tm = _choose_tm(_round_up(M, 8), d_model, itemsize)

    m_pad = _round_up(M, tm)
    if m_pad != M:
        x2d = jnp.pad(x2d, ((0, m_pad - M), (0, 0)))

    # Keep native (possibly bf16) dtype for the MXU; accumulate in f32.
    w_t = weight.T.astype(x2d.dtype)                  # (D, 2)
    b2d = bias.reshape(1, 2).astype(jnp.float32)      # (1, 2)

    cost = pl.CostEstimate(
        flops=4 * m_pad * d_model,                    # (tm,D)@(D,2) matmuls
        transcendentals=2 * m_pad,                    # exp + log1p per row
        bytes_accessed=(m_pad * d_model * itemsize
                        + d_model * 2 * itemsize
                        + m_pad * 2 * itemsize),
    )

    out2d = pl.pallas_call(
        _nsp_kernel,
        out_shape=jax.ShapeDtypeStruct((m_pad, 2), x.dtype),
        grid_spec=pltpu.PrefetchScalarGridSpec(
            num_scalar_prefetch=0,
            grid=(m_pad // tm,),
            in_specs=[
                pl.BlockSpec((tm, d_model), lambda i: (i, 0)),
                pl.BlockSpec((d_model, 2), lambda i: (0, 0)),
                pl.BlockSpec((1, 2), lambda i: (0, 0)),
            ],
            out_specs=pl.BlockSpec((tm, 2), lambda i: (i, 0)),
        ),
        compiler_params=pltpu.CompilerParams(
            dimension_semantics=("parallel",),        # megacore-shard rows (v7x)
            vmem_limit_bytes=32 << 20,
        ),
        cost_estimate=cost,
    )(x2d, w_t, b2d)

    if m_pad != M:
        out2d = out2d[:M]
    return out2d.reshape(*orig_shape[:-1], 2)


if __name__ == "__main__":
    # Small, deterministic setup: batch=2, seq=8, d_model=32.
    B, S, D = 2, 8, 32
    key = jax.random.PRNGKey(0)
    kx, kw, kb = jax.random.split(key, 3)

    x = jax.random.normal(kx, (B, S, D), dtype=jnp.float32)
    # nn.Linear(d_model, 2): weight (2, d_model), bias (2,)
    weight = jax.random.normal(kw, (2, D), dtype=jnp.float32) * 0.05
    bias = jax.random.normal(kb, (2,), dtype=jnp.float32) * 0.05

    out = next_sentence_prediction(x, weight, bias)
    out = jax.block_until_ready(out)

    # Reference check in plain JAX (same math as torch Linear + LogSoftmax).
    logits_ref = x @ weight.T + bias
    ref = jax.nn.log_softmax(logits_ref, axis=-1)
    assert out.shape == (B, S, 2)
    assert jnp.allclose(out, ref, atol=1e-5, rtol=1e-5)

    print("KERNEL_OK")
</pallas_src>

<mosaic_0001>
module attributes {stable_mosaic.version = 11 : i64} {
  func.func @_nsp_kernel(%arg0: i32, %arg1: memref<16x32xf32, #tpu.memory_space<vmem>>, %arg2: memref<32x2xf32, #tpu.memory_space<vmem>>, %arg3: memref<1x2xf32, #tpu.memory_space<vmem>>, %arg4: memref<16x2xf32, #tpu.memory_space<vmem>>) attributes {dimension_semantics = [#tpu.dimension_semantics<parallel>], iteration_bounds = array<i64: 1>, scalar_prefetch = 0 : i64, scratch_operands = 0 : i64, tpu.core_type = #tpu.core_type<tc>, window_params = [{transform_indices = @transform_0, window_bounds = array<i64: 16, 32>}, {pipeline_mode = #tpu.pipeline_mode<synchronous>, transform_indices = @transform_1, window_bounds = array<i64: 32, 2>}, {pipeline_mode = #tpu.pipeline_mode<synchronous>, transform_indices = @transform_2, window_bounds = array<i64: 1, 2>}, {transform_indices = @transform_3, window_bounds = array<i64: 16, 2>}]} {
    %c0 = arith.constant 0 : index
    %c0_0 = arith.constant 0 : index
    %0 = vector.load %arg1[%c0, %c0_0] : memref<16x32xf32, #tpu.memory_space<vmem>>, vector<16x32xf32>
    %c0_1 = arith.constant 0 : index
    %c0_2 = arith.constant 0 : index
    %1 = vector.load %arg2[%c0_1, %c0_2] : memref<32x2xf32, #tpu.memory_space<vmem>>, vector<32x2xf32>
    %cst = arith.constant dense<0.000000e+00> : vector<16x2xf32>
    %2 = tpu.matmul %0, %1, %cst {dimension_numbers = #tpu.dot_dimension_numbers<[1], [0], [0], [1], [0, 0, 1, 1], [], []>} : vector<16x32xf32>, vector<32x2xf32>, vector<16x2xf32> -> vector<16x2xf32>
    %c0_3 = arith.constant 0 : index
    %c0_4 = arith.constant 0 : index
    %3 = vector.load %arg3[%c0_3, %c0_4] : memref<1x2xf32, #tpu.memory_space<vmem>>, vector<1x2xf32>
    %4 = vector.broadcast %3 : vector<1x2xf32> to vector<16x2xf32>
    %5 = arith.addf %2, %4 : vector<16x2xf32>
    %6 = vector.extract_strided_slice %5 {offsets = [0, 0], sizes = [16, 1], strides = [1, 1]} : vector<16x2xf32> to vector<16x1xf32>
    %7 = vector.extract_strided_slice %5 {offsets = [0, 1], sizes = [16, 1], strides = [1, 1]} : vector<16x2xf32> to vector<16x1xf32>
    %8 = arith.subf %7, %6 : vector<16x1xf32>
    %cst_5 = arith.constant 0.000000e+00 : f32
    %9 = vector.broadcast %cst_5 : f32 to vector<16x1xf32>
    %10 = arith.maximumf %8, %9 : vector<16x1xf32>
    %11 = math.absf %8 : vector<16x1xf32>
    %cst_6 = arith.constant 0.000000e+00 : f32
    %12 = vector.broadcast %cst_6 : f32 to vector<16x1xf32>
    %13 = arith.subf %12, %11 : vector<16x1xf32>
    %14 = math.exp %13 : vector<16x1xf32>
    %15 = math.log1p %14 : vector<16x1xf32>
    %16 = arith.addf %10, %15 : vector<16x1xf32>
    %17 = arith.addf %6, %16 : vector<16x1xf32>
    %18 = vector.broadcast %17 : vector<16x1xf32> to vector<16x2xf32>
    %19 = arith.subf %5, %18 : vector<16x2xf32>
    %c0_7 = arith.constant 0 : index
    %c0_8 = arith.constant 0 : index
    %20 = vector.load %arg4[%c0_7, %c0_8] : memref<16x2xf32, #tpu.memory_space<vmem>>, vector<16x2xf32>
    tpu.vector_store %arg4[%c0_7, %c0_8], %19 {strides = array<i32>} : memref<16x2xf32, #tpu.memory_space<vmem>>, vector<16x2xf32>,
    return
  }
  func.func @transform_0(%arg0: i32) -> (i32, i32) {
    %c0_i32 = arith.constant 0 : i32
    %c0_i32_0 = arith.constant 0 : i32
    return %arg0, %c0_i32 : i32, i32
  }
  func.func @transform_1(%arg0: i32) -> (i32, i32) {
    %c0_i32 = arith.constant 0 : i32
    %c0_i32_0 = arith.constant 0 : i32
    %c0_i32_1 = arith.constant 0 : i32
    return %c0_i32, %c0_i32_0 : i32, i32
  }
  func.func @transform_2(%arg0: i32) -> (i32, i32) {
    %c0_i32 = arith.constant 0 : i32
    %c0_i32_0 = arith.constant 0 : i32
    %c0_i32_1 = arith.constant 0 : i32
    return %c0_i32, %c0_i32_0 : i32, i32
  }
  func.func @transform_3(%arg0: i32) -> (i32, i32) {
    %c0_i32 = arith.constant 0 : i32
    %c0_i32_0 = arith.constant 0 : i32
    return %arg0, %c0_i32 : i32, i32
  }
}

</mosaic_0001>

<llo_original>
// kernel: tpu_custom_call.1
$region0: #{tpu_custom_call.1}
  #allocation0 [shape = 'u32[]', space=smem, size = 0x4, offset = 0x4, fixed_abs, tag = 'smem constant byte address 0x4 - core index']
  #allocation1 [shape = 'u32[144,128]{1,0:T(1,128)}', space=vmem, size = 0x12000, scoped, tag = 'internal scratch']
  %s0 = inlined_call_operand.vmem [shape: f32[16,32], index: 0, kind: input, shape index: {}]
  %s1 = inlined_call_operand.vmem [shape: f32[32,2], index: 1, kind: input, shape index: {}]
  %s2 = inlined_call_operand.vmem [shape: f32[1,2], index: 2, kind: input, shape index: {}]
  %s3 = inlined_call_operand.vmem [shape: f32[16,2], index: 3, kind: output, shape index: {}]
  %s4 = sld [smem:[#allocation0]]
  $region22: #{tpu_custom_call.1} parent=0
    _
  %s6 = ssub.s32 1, %s4
  %s7 = scalar_select 0, %s6, %s4
  // Predicated region
  $region2: #{tpu_custom_call.1} parent=0 // pred_check
    _
  $region3: #{tpu_custom_call.1} parent=0 // pred_check_branch
    %9 = sbr.rel (0) target = $region5
  $region4: #{tpu_custom_call.1} parent=0 // pred_region
    _
  $region5: #{tpu_custom_call.1} parent=0 // pred_fallthru
    _
  // Predicated region
  $region6: #{tpu_custom_call.1} parent=0 // pred_check
    _
  $region7: #{tpu_custom_call.1} parent=0 // pred_check_branch
    %11 = sbr.rel (0) target = $region9
  $region8: #{tpu_custom_call.1} parent=0 // pred_region
    _
  $region9: #{tpu_custom_call.1} parent=0 // pred_fallthru
    _
  // Predicated region
  $region10: #{tpu_custom_call.1} parent=0 // pred_check
    _
  $region11: #{tpu_custom_call.1} parent=0 // pred_check_branch
    %13 = sbr.rel (0) target = $region13
  $region12: #{tpu_custom_call.1} parent=0 // pred_region
    _
  $region13: #{tpu_custom_call.1} parent=0 // pred_fallthru
    _
  %v14 = vld [vmem:[%s0] sm:$0xff]
  %v15 = vld [vmem:[%s0 + $0x8] sm:$0xff]
  %v16 = vld [vmem:[%s1] sm:$0xff]
  %v17 = vld [vmem:[%s1 + $0x8] sm:$0xff]
  %v18 = vld [vmem:[%s1 + $0x10] sm:$0xff]
  %v19 = vld [vmem:[%s1 + $0x18] sm:$0xff]
  %v20 = vld [vmem:[%s2] sm:$0x1]
  %v22 = vlaneseq
  %v23 = vshrl.u32 %v22, 7
  %v24 = vsub.s32 0, %v23
  %v25 = vrot.slane %v20, %v24
  %vm27 = vcmask 261120
  %v29 = vsel %vm27, %v14, 0
  %v32 = vsel %vm27, %v15, 0
  %34 = vmatprep.subr.mxu0 0.0
  %35 = vmatpush1.msra.mxu0 0.0
  %36 = vmatprep.subr.mxu0 0.0
  %37 = vmatpush1.msra.mxu0 0.0
  %38 = vmatprep.subr.mxu0 0.0
  %39 = vmatpush1.msra.mxu0 0.0
  %40 = vmatprep.subr.mxu0 0.0
  %41 = vmatpush1.msra.mxu0 0.0
  %42 = vmatprep.subr.mxu0 0.0
  %43 = vmatpush1.msra.mxu0 0.0
  %44 = vmatprep.subr.mxu0 0.0
  %45 = vmatpush1.msra.mxu0 0.0
  %46 = vmatprep.subr.mxu0 0.0
  %47 = vmatpush1.msra.mxu0 0.0
  %48 = vmatprep.subr.mxu0 0.0
  %49 = vmatpush1.msra.mxu0 0.0
  %50 = vmatprep.subr.mxu0 0.0
  %51 = vmatpush1.msra.mxu0 0.0
  %52 = vmatprep.subr.mxu0 0.0
  %53 = vmatpush1.msra.mxu0 0.0
  %54 = vmatprep.subr.mxu0 0.0
  %55 = vmatpush1.msra.mxu0 0.0
  %56 = vmatprep.subr.mxu0 0.0
  %57 = vmatpush1.msra.mxu0 0.0
  %58 = vmatprep.subr.mxu0 0.0
  %59 = vmatpush1.msra.mxu0 %v19
  %60 = vmatprep.subr.mxu0 0.0
  %61 = vmatpush1.msra.mxu0 %v18
  %62 = vmatprep.subr.mxu0 0.0
  %63 = vmatpush1.msra.mxu0 %v17
  %64 = vmatprep.subr.mxu0 0.0
  %65 = vmatpush1.msra.mxu0 %v16
  %66 = vmatprep.subr.mxu0 0.0
  %67 = vmatpush2.msra.mxu0 0.0
  %68 = vmatprep.subr.mxu0 0.0
  %69 = vmatpush2.msra.mxu0 0.0
  %70 = vmatprep.subr.mxu0 0.0
  %71 = vmatpush2.msra.mxu0 0.0
  %72 = vmatprep.subr.mxu0 0.0
  %73 = vmatpush2.msra.mxu0 0.0
  %74 = vmatprep.subr.mxu0 0.0
  %75 = vmatpush2.msra.mxu0 0.0
  %76 = vmatprep.subr.mxu0 0.0
  %77 = vmatpush2.msra.mxu0 0.0
  %78 = vmatprep.subr.mxu0 0.0
  %79 = vmatpush2.msra.mxu0 0.0
  %80 = vmatprep.subr.mxu0 0.0
  %81 = vmatpush2.msra.mxu0 0.0
  %82 = vmatprep.subr.mxu0 0.0
  %83 = vmatpush2.msra.mxu0 0.0
  %84 = vmatprep.subr.mxu0 0.0
  %85 = vmatpush2.msra.mxu0 0.0
  %86 = vmatprep.subr.mxu0 0.0
  %87 = vmatpush2.msra.mxu0 0.0
  %88 = vmatprep.subr.mxu0 0.0
  %89 = vmatpush2.msra.mxu0 0.0
  %90 = vmatprep.subr.mxu0 0.0
  %91 = vmatpush2.msra.mxu0 0.0
  %92 = vmatprep.subr.mxu0 0.0
  %93 = vmatpush2.msra.mxu0 0.0
  %94 = vmatprep.subr.mxu0 0.0
  %95 = vmatpush2.msra.mxu0 0.0
  %96 = vmatprep.subr.mxu0 0.0
  %97 = vmatpush2.msra.mxu0 0.0
  %98 = vmatprep.mubr.f32.mxu0 0.0
  %99 = vmatmul.mubr.f32.gmra.mxu0 %v29
  %v100 = vpop.f32.mrf.mxu0
  %v101 = vadd.f32 %v25, %v100
  %v102 = vpop.f32.mrf.mxu0
  %103 = vmatprep.mubr.f32.mxu0 0.0
  %104 = vmatmul.mubr.f32.gmra.mxu0 %v32
  %v105 = vpop.f32.mrf.mxu0
  %v106 = vadd.f32 %v25, %v105
  %v107 = vpop.f32.mrf.mxu0
  %108 = vdwg.mxu0
  %111 = vrot.lane.b32.xlu0 %v101, 1
  %v112 = vpop.permute.xlu0 %111
  %113 = vrot.lane.b32.xlu0 %v106, 1
  %v114 = vpop.permute.xlu0 %113
  %v117 = vsub.f32 %v101, %v112
  %v118 = vsub.f32 %v106, %v114
  %v119 = vmax.f32 %v117, 0.0
  %v120 = vmax.f32 %v118, 0.0
  %v121 = vand.u32 2147483647, %v117
  %v122 = vand.u32 2147483647, %v118
  %v123 = vsub.f32 0.0, %v121
  %v124 = vsub.f32 0.0, %v122
  %v125 = vmul.f32 %v123, 1.442695
  %v126 = vpow.pop %v125
  %v127 = vmul.f32 %v124, 1.442695
  %v128 = vpow.pop %v127
  %v129 = vadd.f32 %v126, 1.0
  %v130 = vlog2.pop %v129
  %v131 = vmul.f32 %v130, 0.6931472
  %v132 = vmul.f32 -0.5, %v126
  %v133 = vadd.f32 %v132, 1.0
  %v134 = vmul.f32 %v133, %v126
  %v135 = vand.u32 2147483647, %v126
  %vm136 = vcmp.lt.f32.partialorder %v135, 0.0004427343
  %v137 = vsel %vm136, %v134, %v131
  %v138 = vadd.f32 %v128, 1.0
  %v139 = vlog2.pop %v138
  %v140 = vmul.f32 %v139, 0.6931472
  %v141 = vmul.f32 -0.5, %v128
  %v142 = vadd.f32 %v141, 1.0
  %v143 = vmul.f32 %v142, %v128
  %v144 = vand.u32 2147483647, %v128
  %vm145 = vcmp.lt.f32.partialorder %v144, 0.0004427343
  %v146 = vsel %vm145, %v143, %v140
  %v147 = vadd.f32 %v119, %v137
  %v148 = vadd.f32 %v120, %v146
  %151 = vrot.lane.b32.xlu0 %v147, 127
  %v152 = vpop.permute.xlu0 %151
  %153 = vrot.lane.b32.xlu0 %v148, 127
  %v154 = vpop.permute.xlu0 %153
  %v157 = vadd.f32 %v101, %v152
  %v158 = vadd.f32 %v106, %v154
  %160 = vset.pattern.permute.xlu0 0
  %161 = vperm.xlu0 %160, %v157
  %v162 = vpop.permute.xlu0 %161
  %165 = vset.pattern.permute.xlu0 0
  %166 = vperm.xlu0 %165, %v158
  %v167 = vpop.permute.xlu0 %166
  %v169 = vsub.f32 %v101, %v162
  %v170 = vsub.f32 %v106, %v167
  %vm171 = vcmask 15360
  %172 = vst.msk [vmem:[%s3] sm:$0xff] %vm171, %v169
  %173 = vst.msk [vmem:[%s3 + $0x8] sm:$0xff] %vm171, %v170
  // Predicated region
  $region14: #{tpu_custom_call.1} parent=0 // pred_check
    _
  $region15: #{tpu_custom_call.1} parent=0 // pred_check_branch
    %175 = sbr.rel (0) target = $region17
  $region16: #{tpu_custom_call.1} parent=0 // pred_region
    _
  $region17: #{tpu_custom_call.1} parent=0 // pred_fallthru
    _
  // Predicated region
  $region18: #{tpu_custom_call.1} parent=0 // pred_check
    _
  $region19: #{tpu_custom_call.1} parent=0 // pred_check_branch
    %177 = sbr.rel (0) target = $region21
  $region20: #{tpu_custom_call.1} parent=0 // pred_region
    _
  $region21: #{tpu_custom_call.1} parent=0 // pred_fallthru
    _

</llo_original>
